<compile_context>
chip_gen: v5e
topology: v5e:2x2
jax: 0.10.0
libtpu: 0.0.40
codegen_flags: <defaults>
</compile_context>

<pallas_src>
import functools

import jax
import jax.numpy as jnp
from jax.experimental import pallas as pl
from jax.experimental.pallas import tpu as pltpu
import numpy as np


def _round_up(x, m):
    return ((x + m - 1) // m) * m


def _fused_kernel(x_ref, c_ref, b_ref, o_ref, *, inv_sqrt_fd):
    """One (tm, tn) output tile, full-K matmul: no accumulator, no reduction axis."""
    z = jnp.dot(x_ref[...], c_ref[...], preferred_element_type=jnp.float32)
    z = z + b_ref[...]                       # bias broadcast over rows (VPU)
    o_ref[...] = (jnp.cos(z) * inv_sqrt_fd).astype(o_ref.dtype)


def _reduction_kernel(x_ref, c_ref, b_ref, o_ref, acc_ref, *, inv_sqrt_fd):
    """Fallback for large K: reduce over the last grid axis with a f32 accumulator."""
    k = pl.program_id(2)

    @pl.when(k == 0)
    def _():
        acc_ref[...] = jnp.zeros_like(acc_ref)

    acc_ref[...] += jnp.dot(
        x_ref[...], c_ref[...], preferred_element_type=jnp.float32
    )

    @pl.when(k == pl.num_programs(2) - 1)
    def _():
        z = acc_ref[...] + b_ref[...]
        o_ref[...] = (jnp.cos(z) * inv_sqrt_fd).astype(o_ref.dtype)


def feature_mapping_forward(x, centers, bias, *, tm=512, tn=512, max_k_block=1024):
    """cos(x @ centers + bias) / sqrt(feature_dim) via a tiled Pallas kernel.

    tm/tn: output tile (clamped to padded problem extents, multiples of (8,128)).
    max_k_block: largest K handled in a single block; above this the kernel
    falls back to a 3-D grid with a VMEM accumulator.
    """
    M, K = x.shape
    K2, N = centers.shape
    assert K == K2 and bias.shape == (N,)

    out_dtype = x.dtype
    inv_sqrt_fd = 1.0 / float(np.sqrt(N))

    # Effective tiles: multiples of (8, 128), no bigger than the padded extents.
    tm_eff = min(tm, _round_up(M, 8))
    tn_eff = min(tn, _round_up(N, 128))
    Mp = _round_up(M, tm_eff)
    Np = _round_up(N, tn_eff)

    bias2d = bias.reshape(1, N)
    if Np != N:
        bias2d = jnp.pad(bias2d, ((0, 0), (0, Np - N)))

    if K <= max_k_block:
        # --- Fused path: 2-D grid, full K per block, no scratch. ---
        xp = jnp.pad(x, ((0, Mp - M), (0, 0))) if Mp != M else x
        cp = jnp.pad(centers, ((0, 0), (0, Np - N))) if Np != N else centers

        kernel = functools.partial(_fused_kernel, inv_sqrt_fd=inv_sqrt_fd)
        out = pl.pallas_call(
            kernel,
            out_shape=jax.ShapeDtypeStruct((Mp, Np), out_dtype),
            grid_spec=pltpu.PrefetchScalarGridSpec(
                num_scalar_prefetch=0,
                grid=(Mp // tm_eff, Np // tn_eff),
                in_specs=[
                    pl.BlockSpec((tm_eff, K), lambda i, j: (i, 0)),    # x
                    pl.BlockSpec((K, tn_eff), lambda i, j: (0, j)),    # centers
                    pl.BlockSpec((1, tn_eff), lambda i, j: (0, j)),    # bias
                ],
                out_specs=pl.BlockSpec((tm_eff, tn_eff), lambda i, j: (i, j)),
            ),
            compiler_params=pltpu.CompilerParams(
                dimension_semantics=("parallel", "parallel")
            ),
        )(xp, cp, bias2d)
    else:
        # --- Large-K fallback: 3-D grid, f32 accumulator in VMEM. ---
        tk_eff = max(128, (max_k_block // 128) * 128)
        Kp = _round_up(K, tk_eff)
        xp = jnp.pad(x, ((0, Mp - M), (0, Kp - K)))
        cp = jnp.pad(centers, ((0, Kp - K), (0, Np - N)))

        kernel = functools.partial(_reduction_kernel, inv_sqrt_fd=inv_sqrt_fd)
        out = pl.pallas_call(
            kernel,
            out_shape=jax.ShapeDtypeStruct((Mp, Np), out_dtype),
            grid_spec=pltpu.PrefetchScalarGridSpec(
                num_scalar_prefetch=0,
                grid=(Mp // tm_eff, Np // tn_eff, Kp // tk_eff),
                in_specs=[
                    pl.BlockSpec((tm_eff, tk_eff), lambda i, j, k: (i, k)),   # x
                    pl.BlockSpec((tk_eff, tn_eff), lambda i, j, k: (k, j)),   # centers
                    pl.BlockSpec((1, tn_eff), lambda i, j, k: (0, j)),        # bias
                ],
                out_specs=pl.BlockSpec((tm_eff, tn_eff), lambda i, j, k: (i, j)),
                scratch_shapes=[pltpu.VMEM((tm_eff, tn_eff), jnp.float32)],
            ),
            compiler_params=pltpu.CompilerParams(
                dimension_semantics=("parallel", "parallel", "arbitrary")
            ),
        )(xp, cp, bias2d)

    return out[:M, :N]


def make_params(key, input_size, feature_dim, feature_bd):
    """Deterministic synthetic parameters mirroring the PyTorch __init__."""
    k1, k2 = jax.random.split(key)
    centers = jax.random.normal(k1, (input_size, feature_dim), jnp.float32) / feature_bd
    bias = jax.random.uniform(k2, (feature_dim,), jnp.float32) * 2.0 * np.pi
    centers = centers.at[:, 0].set(0.0)
    bias = bias.at[0].set(0.0)
    return centers, bias


def _reference(x, centers, bias):
    return jnp.cos(x @ centers + bias) / jnp.sqrt(float(centers.shape[1]))


if __name__ == "__main__":
    key = jax.random.PRNGKey(0)
    k1, k2, k3, k4, k5, k6 = jax.random.split(key, 6)

    # --- 1) Small shapes consistent with the module's forward (fused path). ---
    batch, input_size, feature_dim, feature_bd = 8, 32, 128, 4.0
    x = jax.random.normal(k1, (batch, input_size), jnp.float32)
    centers, bias = make_params(k2, input_size, feature_dim, feature_bd)
    out = jax.block_until_ready(feature_mapping_forward(x, centers, bias))
    np.testing.assert_allclose(
        np.asarray(out), np.asarray(_reference(x, centers, bias)),
        rtol=1e-5, atol=1e-5,
    )

    # --- 2) Non-multiple shapes (exercises zero-padding in the wrapper). ---
    x2 = jax.random.normal(k3, (37, 24), jnp.float32)
    c2, b2 = make_params(k4, 24, 200, feature_bd)
    out2 = jax.block_until_ready(feature_mapping_forward(x2, c2, b2))
    np.testing.assert_allclose(
        np.asarray(out2), np.asarray(_reference(x2, c2, b2)),
        rtol=1e-5, atol=1e-5,
    )

    # --- 3) Force the large-K reduction fallback (small K, tiny max_k_block). ---
    x3 = jax.random.normal(k5, (16, 256), jnp.float32)
    c3, b3 = make_params(k6, 256, 128, feature_bd)
    out3 = jax.block_until_ready(
        feature_mapping_forward(x3, c3, b3, max_k_block=128)
    )
    np.testing.assert_allclose(
        np.asarray(out3), np.asarray(_reference(x3, c3, b3)),
        rtol=1e-5, atol=1e-5,
    )

    print("KERNEL_OK")
</pallas_src>

<mosaic_0001>
module attributes {stable_mosaic.version = 11 : i64} {
  func.func @_fused_kernel(%arg0: i32, %arg1: i32, %arg2: memref<8x32xf32, #tpu.memory_space<vmem>>, %arg3: memref<32x128xf32, #tpu.memory_space<vmem>>, %arg4: memref<1x128xf32, #tpu.memory_space<vmem>>, %arg5: memref<8x128xf32, #tpu.memory_space<vmem>>) attributes {dimension_semantics = [#tpu.dimension_semantics<parallel>, #tpu.dimension_semantics<parallel>], iteration_bounds = array<i64: 1, 1>, scalar_prefetch = 0 : i64, scratch_operands = 0 : i64, tpu.core_type = #tpu.core_type<tc>, window_params = [{transform_indices = @transform_0, window_bounds = array<i64: 8, 32>}, {transform_indices = @transform_1, window_bounds = array<i64: 32, 128>}, {transform_indices = @transform_2, window_bounds = array<i64: 1, 128>}, {transform_indices = @transform_3, window_bounds = array<i64: 8, 128>}]} {
    %c0 = arith.constant 0 : index
    %c0_0 = arith.constant 0 : index
    %0 = vector.load %arg2[%c0, %c0_0] : memref<8x32xf32, #tpu.memory_space<vmem>>, vector<8x32xf32>
    %c0_1 = arith.constant 0 : index
    %c0_2 = arith.constant 0 : index
    %1 = vector.load %arg3[%c0_1, %c0_2] : memref<32x128xf32, #tpu.memory_space<vmem>>, vector<32x128xf32>
    %cst = arith.constant dense<0.000000e+00> : vector<8x128xf32>
    %2 = tpu.matmul %0, %1, %cst {dimension_numbers = #tpu.dot_dimension_numbers<[1], [0], [0], [1], [0, 0, 1, 1], [], []>} : vector<8x32xf32>, vector<32x128xf32>, vector<8x128xf32> -> vector<8x128xf32>
    %c0_3 = arith.constant 0 : index
    %c0_4 = arith.constant 0 : index
    %3 = vector.load %arg4[%c0_3, %c0_4] : memref<1x128xf32, #tpu.memory_space<vmem>>, vector<1x128xf32>
    %4 = vector.broadcast %3 : vector<1x128xf32> to vector<8x128xf32>
    %5 = arith.addf %2, %4 : vector<8x128xf32>
    %6 = math.cos %5 : vector<8x128xf32>
    %cst_5 = arith.constant 0.0883883461 : f32
    %7 = vector.broadcast %cst_5 : f32 to vector<8x128xf32>
    %8 = arith.mulf %6, %7 : vector<8x128xf32>
    %c0_6 = arith.constant 0 : index
    %c0_7 = arith.constant 0 : index
    %9 = vector.load %arg5[%c0_6, %c0_7] : memref<8x128xf32, #tpu.memory_space<vmem>>, vector<8x128xf32>
    tpu.vector_store %arg5[%c0_6, %c0_7], %8 {strides = array<i32>} : memref<8x128xf32, #tpu.memory_space<vmem>>, vector<8x128xf32>,
    return
  }
  func.func @transform_0(%arg0: i32, %arg1: i32) -> (i32, i32) {
    %c0_i32 = arith.constant 0 : i32
    %c0_i32_0 = arith.constant 0 : i32
    return %arg0, %c0_i32 : i32, i32
  }
  func.func @transform_1(%arg0: i32, %arg1: i32) -> (i32, i32) {
    %c0_i32 = arith.constant 0 : i32
    %c0_i32_0 = arith.constant 0 : i32
    return %c0_i32, %arg1 : i32, i32
  }
  func.func @transform_2(%arg0: i32, %arg1: i32) -> (i32, i32) {
    %c0_i32 = arith.constant 0 : i32
    %c0_i32_0 = arith.constant 0 : i32
    return %c0_i32, %arg1 : i32, i32
  }
  func.func @transform_3(%arg0: i32, %arg1: i32) -> (i32, i32) {
    %c0_i32 = arith.constant 0 : i32
    return %arg0, %arg1 : i32, i32
  }
}

</mosaic_0001>

<llo_original>
// kernel: tpu_custom_call.1
$region0: #{tpu_custom_call.1}
  #allocation0 [shape = 'u32[]', space=smem, size = 0x4, offset = 0x4, fixed_abs, tag = 'smem constant byte address 0x4 - core index']
  #allocation1 [shape = 'u32[72,128]{1,0:T(1,128)}', space=vmem, size = 0x9000, scoped, tag = 'internal scratch']
  %s0 = inlined_call_operand.hbm [shape: f32[8,32], index: 0, kind: input, shape index: {}]
  %s1 = inlined_call_operand.hbm [shape: f32[32,128], index: 1, kind: input, shape index: {}]
  %s2 = inlined_call_operand.vmem [shape: f32[1,128], index: 2, kind: input, shape index: {}]
  %s3 = inlined_call_operand.hbm [shape: f32[8,128], index: 3, kind: output, shape index: {}]
  %s4 = sld [smem:[#allocation0]]
  $region30: #{tpu_custom_call.1} parent=0
    _
  %s6 = ssub.s32 1, %s4
  %s7 = scalar_select 0, %s6, %s4
  $region1: #{tpu_custom_call.1} parent=0
    #allocation2 [shape = 'u8[4096]{0}', space=vmem, size = 0x1000, scoped, tag = 'input window, operand 0, single buffered']
    #allocation3 [shape = 's32[1]{0}', space=sflag, size = 0x4, scoped, tag = 'scoped memory for tpu_custom_call.1']
    #allocation4 [shape = 's32[1]{0}', space=sflag, size = 0x4, scoped, tag = 'scoped memory for tpu_custom_call.1']
    #allocation5 [shape = 'u8[16384]{0}', space=vmem, size = 0x4000, scoped, tag = 'input window, operand 1, single buffered']
    #allocation6 [shape = 's32[1]{0}', space=sflag, size = 0x4, scoped, tag = 'scoped memory for tpu_custom_call.1']
    #allocation7 [shape = 'u8[4096]{0}', space=vmem, size = 0x1000, scoped, tag = 'output window, operand 0, single buffered']
    %8 = vsyncpa [#allocation3], 0
    %9 = vsyncpa [#allocation6], 0
    %10 = vsyncpa [#allocation4], 0
    // Predicated region
    $region2: #{tpu_custom_call.1} parent=1 // pred_check
      _
    $region3: #{tpu_custom_call.1} parent=1 // pred_check_branch
      %12 = sbr.rel (0) target = $region5
    $region4: #{tpu_custom_call.1} parent=1 // pred_region
      %14 = vsyncadd [#allocation3], 0
      %s16 = sshll.u32 %s0, 4
      %s17 = int_to_ptr.hbm [resolvable:$true] %s16
      %s18 = sshll.u32 [#allocation2], 4
      %s19 = int_to_ptr.vmem [resolvable:$true] %s18
      %21 = dma.hbm_to_vmem [thread:$0]  %s17, 128, %s19, [#allocation3]
    $region5: #{tpu_custom_call.1} parent=1 // pred_fallthru
      _
    // Predicated region
    $region6: #{tpu_custom_call.1} parent=1 // pred_check
      _
    $region7: #{tpu_custom_call.1} parent=1 // pred_check_branch
      %23 = sbr.rel (0) target = $region9
    $region8: #{tpu_custom_call.1} parent=1 // pred_region
      %25 = vsyncadd [#allocation6], 0
      %s26 = sshll.u32 %s1, 4
      %s27 = int_to_ptr.hbm [resolvable:$true] %s26
      %s28 = sshll.u32 [#allocation5], 4
      %s29 = int_to_ptr.vmem [resolvable:$true] %s28
      %34 = dma.hbm_to_vmem [thread:$0]  %s27, 512, %s29, [#allocation6], 128, 128, 8
    $region9: #{tpu_custom_call.1} parent=1 // pred_fallthru
      _
    // Predicated region
    $region10: #{tpu_custom_call.1} parent=1 // pred_check
      _
    $region11: #{tpu_custom_call.1} parent=1 // pred_check_branch
      %36 = sbr.rel (0) target = $region13
    $region12: #{tpu_custom_call.1} parent=1 // pred_region
      _
    $region13: #{tpu_custom_call.1} parent=1 // pred_fallthru
      _
    // Predicated region
    $region14: #{tpu_custom_call.1} parent=1 // pred_check
      _
    $region15: #{tpu_custom_call.1} parent=1 // pred_check_branch
      %38 = sbr.rel (0) target = $region17
    $region16: #{tpu_custom_call.1} parent=1 // pred_region
      %40 = dma.done [#allocation3], 128
    $region17: #{tpu_custom_call.1} parent=1 // pred_fallthru
      _
    // Predicated region
    $region18: #{tpu_custom_call.1} parent=1 // pred_check
      _
    $region19: #{tpu_custom_call.1} parent=1 // pred_check_branch
      %42 = sbr.rel (0) target = $region21
    $region20: #{tpu_custom_call.1} parent=1 // pred_region
      %44 = dma.done [#allocation6], 512
    $region21: #{tpu_custom_call.1} parent=1 // pred_fallthru
      _
    %v45 = vld [vmem:[#allocation2] sm:$0xff]
    %v46 = vld [vmem:[#allocation5] sm:$0xff]
    %v47 = vld [vmem:[#allocation5 + $0x8] sm:$0xff]
    %v48 = vld [vmem:[#allocation5 + $0x10] sm:$0xff]
    %v49 = vld [vmem:[#allocation5 + $0x18] sm:$0xff]
    %v50 = vld [vmem:[%s2] sm:$0x1]
    %v52 = vperm.slane %v50, 0
    %vm54 = vcmask 261120
    %v56 = vsel %vm54, %v45, 0
    %58 = vmatpush.msra.mxu0 0.0
    %59 = vmatpush.msra.mxu0 0.0
    %60 = vmatpush.msra.mxu0 0.0
    %61 = vmatpush.msra.mxu0 0.0
    %62 = vmatpush.msra.mxu0 0.0
    %63 = vmatpush.msra.mxu0 0.0
    %64 = vmatpush.msra.mxu0 0.0
    %65 = vmatpush.msra.mxu0 0.0
    %66 = vmatpush.msra.mxu0 0.0
    %67 = vmatpush.msra.mxu0 0.0
    %68 = vmatpush.msra.mxu0 0.0
    %69 = vmatpush.msra.mxu0 0.0
    %70 = vmatpush.msra.mxu0 %v49
    %71 = vmatpush.msra.mxu0 %v48
    %72 = vmatpush.msra.mxu0 %v47
    %73 = vmatpush.msra.mxu0 %v46
    %74 = vmatmul.f32.gmra.mxu0 %v56
    %v75 = vpop.f32.mrf.mxu0
    %v76 = vadd.f32 %v52, %v75
    %77 = vdwg.mxu0
    %v78 = vand.u32 2147483647, %v76
    %vm79 = vcmp.le.f32.partialorder %v78, 0.7853982
    %vm80 = vcmp.lt.s32.totalorder %v76, 0
    %v81 = vand.u32 %v76, 2139095040
    %v82 = vshrl.u32 %v81, 23
    %v83 = vsub.s32 %v82, 127
    %v84 = vand.u32 2147483647, %v76
    %v85 = vand.u32 %v84, 8388607
    %v86 = vor.u32 %v85, 8388608
    %v87 = vsub.s32 0, %v86
    %v88 = vadd.s32 %v83, 1
    %vm89 = vcmp.gt.s32.totalorder %v88, 0
    %v90 = vsel %vm89, %v88, 0
    %v91 = vshrl.u32 %v90, 5
    %v92 = vand.u32 %v90, 31
    %v93 = vsub.s32 32, %v92
    %v94 = vshrl.u32 683565275, %v93
    %v95 = vshll.u32 683565275, %v92
    %v96 = vshrl.u32 2475754826, %v93
    %v97 = vor.u32 %v95, %v96
    %v98 = vshll.u32 2475754826, %v92
    %v99 = vshrl.u32 2131351028, %v93
    %v100 = vor.u32 %v98, %v99
    %v101 = vshll.u32 2131351028, %v92
    %v102 = vshrl.u32 2102212464, %v93
    %v103 = vor.u32 %v101, %v102
    %v104 = vshll.u32 2102212464, %v92
    %v105 = vshrl.u32 920167782, %v93
    %v106 = vor.u32 %v104, %v105
    %v107 = vshll.u32 920167782, %v92
    %v108 = vshrl.u32 1326507024, %v93
    %v109 = vor.u32 %v107, %v108
    %vm110 = vcmp.lt.s32.totalorder %v91, 1
    %vm111 = vcmp.lt.s32.totalorder %v91, 2
    %vm112 = vcmp.lt.s32.totalorder %v91, 3
    %vm113 = vcmp.lt.s32.totalorder %v91, 4
    %v114 = vsel %vm110, %v94, %v97
    %v115 = vsel %vm113, %v103, 2102212464
    %v116 = vsel %vm112, %v100, %v115
    %v117 = vsel %vm111, %v114, %v116
    %v118 = vsel %vm110, %v97, %v100
    %v119 = vsel %vm113, %v106, 920167782
    %v120 = vsel %vm112, %v103, %v119
    %v121 = vsel %vm111, %v118, %v120
    %v122 = vsel %vm110, %v100, %v103
    %v123 = vsel %vm113, %v109, 1326507024
    %v124 = vsel %vm112, %v106, %v123
    %v125 = vsel %vm111, %v122, %v124
    %v126 = vshll.u32 %v86, 8
    %v127 = vand.u32 %v126, 65535
    %v128 = vshrl.u32 %v126, 16
    %v129 = vand.u32 %v125, 65535
    %v130 = vshrl.u32 %v125, 16
    %v131 = vmul.u32 %v127, %v129
    %v132 = vmul.u32 %v127, %v130
    %v133 = vmul.u32 %v128, %v129
    %v134 = vmul.u32 %v128, %v130
    %v135 = vshll.u32 %v132, 16
    %v136 = vshrl.u32 %v132, 16
    %v137 = vshll.u32 %v133, 16
    %v138 = vshrl.u32 %v133, 16
    %vm139 = vc.u32 %v131, %v135
    %v140 = vsel %vm139, 1, 0
    %v141 = vadd.s32 %v131, %v135
    %v142 = vadd.s32 %v134, %v140
    %vm143 = vc.u32 %v141, %v137
    %v144 = vsel %vm143, 1, 0
    %v145 = vadd.s32 %v141, %v137
    %v146 = vadd.s32 %v142, %v144
    %v147 = vadd.s32 %v146, %v136
    %v148 = vadd.s32 %v147, %v138
    %v149 = vand.u32 %v126, 65535
    %v150 = vshrl.u32 %v126, 16
    %v151 = vand.u32 %v121, 65535
    %v152 = vshrl.u32 %v121, 16
    %v153 = vmul.u32 %v149, %v151
    %v154 = vmul.u32 %v149, %v152
    %v155 = vmul.u32 %v150, %v151
    %v156 = vmul.u32 %v150, %v152
    %v157 = vshll.u32 %v154, 16
    %v158 = vshrl.u32 %v154, 16
    %v159 = vshll.u32 %v155, 16
    %v160 = vshrl.u32 %v155, 16
    %vm161 = vc.u32 %v153, %v157
    %v162 = vsel %vm161, 1, 0
    %v163 = vadd.s32 %v153, %v157
    %v164 = vadd.s32 %v156, %v162
    %vm165 = vc.u32 %v163, %v159
    %v166 = vsel %vm165, 1, 0
    %v167 = vadd.s32 %v163, %v159
    %v168 = vadd.s32 %v164, %v166
    %v169 = vadd.s32 %v168, %v158
    %v170 = vadd.s32 %v169, %v160
    %v171 = vmul.u32 %v126, %v117
    %v172 = vadd.s32 %v148, %v167
    %vm173 = vc.u32 %v148, %v167
    %v174 = vadd.s32 %v170, 1
    %v175 = vsel %vm173, %v174, %v170
    %v176 = vadd.s32 %v171, %v175
    %v177 = vadd.s32 %v176, 536870912
    %v178 = vshrl.u32 %v177, 30
    %v179 = vshll.u32 %v178, 30
    %v180 = vsub.s32 %v176, %v179
    %vm181 = vcmp.lt.s32.totalorder %v180, 0
    %v182 = vsub.s32 0, %v180
    %v183 = vsel %vm181, %v182, %v180
    %v184 = vclz %v183
    %v185 = vsub.s32 %v184, 2
    %vm186 = vcmp.gt.s32.totalorder 0, %v185
    %v187 = vsel %vm186, 0, %v185
    %v188 = vsub.s32 32, %v187
    %v189 = vshll.u32 %v180, %v187
    %v190 = vshrl.u32 %v172, %v188
    %v191 = vor.u32 %v189, %v190
    %v192 = vsub.s32 4294967266, %v187
    %v193 = vadd.s32 %v192, 127
    %v194 = vshll.u32 %v193, 23
    %v195 = vor.u32 4788187, %v194
    %v196 = vand.u32 2147483647, %v195
    %v198 = vcvt.s32.f32 %v191
    %v199 = vmul.f32 %v198, %v196
    %v200 = vxor.u32 %v199, 2147483648
    %v201 = vsel %vm80, %v200, %v199
    %v202 = vsub.s32 4, %v178
    %v203 = vsel %vm80, %v202, %v178
    %v204 = vsel %vm79, %v76, %v201
    %v205 = vsel %vm79, 0, %v203
    %v206 = vmul.f32 %v204, %v204
    %v207 = vmul.f32 %v206, -0.001358992
    %v208 = vadd.f32 %v207, 0.041655596
    %v209 = vmul.f32 %v206, %v208
    %v210 = vadd.f32 %v209, -0.4999988
    %v211 = vmul.f32 %v206, %v210
    %v212 = vadd.f32 1.0, %v211
    %v213 = vmul.f32 %v204, %v204
    %v214 = vmul.f32 %v213, -0.00019511016
    %v215 = vadd.f32 %v214, 0.008332121
    %v216 = vmul.f32 %v213, %v215
    %v217 = vadd.f32 %v216, -0.16666654
    %v218 = vmul.f32 %v213, %v217
    %v219 = vadd.f32 %v218, 1.0
    %v220 = vmul.f32 %v219, %v204
    %vm221 = vweird.f32 %v76
    %v222 = vand.u32 %v205, 3
    %vm223 = vcmp.lt.s32.totalorder %v222, 2
    %vm224 = vcmp.eq.s32.totalorder %v222, 0
    %v225 = vxor.u32 %v220, 2147483648
    %v226 = vsel %vm224, %v212, %v225
    %vm227 = vcmp.eq.s32.totalorder %v222, 2
    %v228 = vxor.u32 %v212, 2147483648
    %v229 = vsel %vm227, %v228, %v220
    %v230 = vsel %vm223, %v226, %v229
    %v231 = vsel %vm221, nan, %v230
    %v232 = vmul.f32 %v231, 0.088388346
    %233 = vst [vmem:[#allocation7] sm:$0xff] %v232
    // Predicated region
    $region22: #{tpu_custom_call.1} parent=1 // pred_check
      _
    $region23: #{tpu_custom_call.1} parent=1 // pred_check_branch
      %235 = sbr.rel (0) target = $region25
    $region24: #{tpu_custom_call.1} parent=1 // pred_region
      %237 = vsyncadd [#allocation4], 0
      %s239 = sshll.u32 [#allocation7], 4
      %s240 = int_to_ptr.vmem [resolvable:$true] %s239
      %s241 = sshll.u32 %s3, 4
      %s242 = int_to_ptr.hbm [resolvable:$true] %s241
      %244 = dma.vmem_to_hbm [thread:$0]  %s240, 128, %s242, [#allocation4]
    $region25: #{tpu_custom_call.1} parent=1 // pred_fallthru
      _
    // Predicated region
    $region26: #{tpu_custom_call.1} parent=1 // pred_check
      _
    $region27: #{tpu_custom_call.1} parent=1 // pred_check_branch
      %246 = sbr.rel (0) target = $region29
    $region28: #{tpu_custom_call.1} parent=1 // pred_region
      %248 = dma.done [#allocation4], 128
    $region29: #{tpu_custom_call.1} parent=1 // pred_fallthru
      _
    %249 = vsyncpa [#allocation3], 1
    %250 = vsyncpa [#allocation6], 1
    %251 = vsyncpa [#allocation4], 1

</llo_original>
